<compile_context>
chip_gen: v6e
topology: v6e:2x2x1
jax: 0.10.0
libtpu: 0.0.40
codegen_flags: <defaults>
</compile_context>

<pallas_src>
import functools

import jax
import jax.numpy as jnp
from jax import lax
from jax.experimental import pallas as pl
from jax.experimental.pallas import tpu as pltpu


def _resblock_kernel(col_ref, x_ref, w1_ref, b1_ref, w2_ref, b2_ref, out_ref,
                     *, H, W, C, d, mm_dtype):
    """Fused ResBlock for one batch element (channels on sublanes, H*W on lanes).

    col_ref : (1, H*W) int32   column (w) index of each flattened pixel
    x_ref   : (1, C, H*W)      input activations (flattened NCHW)
    w*_ref  : (C, 9*C)         conv weights, Wmat[co, (kh*3+kw)*C + ci]
    b*_ref  : (C, 1)           conv biases
    out_ref : (1, C, H*W)
    """
    HW = H * W
    PAD = d * (W + 1)                      # covers the largest |tap shift| = d*W + d

    col = col_ref[...]                     # (1, HW) int32
    # Column-validity masks for horizontally shifted taps; shared by both convs
    # and by all three kh rows (hoisted once, reused).
    valid_left = jnp.broadcast_to(col >= d, (C, HW))        # tap shift dx = -d
    valid_right = jnp.broadcast_to(col < (W - d), (C, HW))  # tap shift dx = +d

    def leaky(v):
        return jnp.where(v >= 0, v, 0.2 * v)

    def conv3x3(src_f32, w_ref, b_ref):
        """src_f32: (C, HW) float32. Returns conv(src) + bias as (C, HW) float32."""
        src = src_f32.astype(mm_dtype)
        zpad = jnp.zeros((C, PAD), mm_dtype)
        xm = jnp.concatenate([zpad, src, zpad], axis=1)      # (C, HW + 2*PAD)
        taps = []
        for kh in range(3):
            dy = (kh - 1) * d
            for kw in range(3):
                dx = (kw - 1) * d
                start = PAD + dy * W + dx
                tap = xm[:, start:start + HW]                # static lane slice
                if dx < 0:
                    tap = jnp.where(valid_left, tap, jnp.zeros_like(tap))
                elif dx > 0:
                    tap = jnp.where(valid_right, tap, jnp.zeros_like(tap))
                taps.append(tap)
        patches = jnp.concatenate(taps, axis=0)              # (9C, HW)
        acc = jnp.dot(w_ref[...], patches,
                      preferred_element_type=jnp.float32)    # single MXU matmul
        return acc + b_ref[...]                              # (C, HW) f32

    x = x_ref[0].astype(jnp.float32)                         # (C, HW); also residual
    t = leaky(conv3x3(x, w1_ref, b1_ref))
    y = leaky(conv3x3(t, w2_ref, b2_ref) + x)                # residual = loaded input
    out_ref[0] = y.astype(out_ref.dtype)                     # lane-dense store


def resblock_pallas(x_nchw, w1, b1, w2, b2, *, dilation=1, mm_dtype=jnp.float32):
    """x_nchw: (N, C, H, W) float32; w*: (3, 3, C, C) HWIO; b*: (C,).

    mm_dtype: dtype of the MXU matmul operands (use jnp.bfloat16 on v6e/v7x for
    ~2x MXU rate; accumulation and the LeakyReLU/residual epilogue stay f32).
    """
    d = dilation
    N, C, H, W = x_nchw.shape
    HW = H * W

    x_flat = x_nchw.reshape(N, C, HW)                        # free (contiguous)

    def to_mat(w):   # HWIO (3,3,C,C) -> (C, 9C): rows = c_out, cols = (kh, kw, ci)
        return jnp.transpose(w.reshape(9 * C, C)).astype(mm_dtype)

    w1m, w2m = to_mat(w1), to_mat(w2)
    b1c = b1.reshape(C, 1).astype(jnp.float32)
    b2c = b2.reshape(C, 1).astype(jnp.float32)
    col = jnp.tile(jnp.arange(W, dtype=jnp.int32), H).reshape(1, HW)

    kernel = functools.partial(_resblock_kernel, H=H, W=W, C=C, d=d,
                               mm_dtype=mm_dtype)

    # Per-step VMEM footprint: double-buffered x/out blocks + weights + headroom.
    act_bytes = C * HW * jnp.dtype(x_nchw.dtype).itemsize
    w_bytes = 2 * (C * 9 * C) * jnp.dtype(mm_dtype).itemsize
    est = 4 * act_bytes + 4 * w_bytes + 6 * C * HW * 4 + (8 << 20)
    vmem_limit = int(min(100 * 2**20, max(32 * 2**20, est)))

    out = pl.pallas_call(
        kernel,
        out_shape=jax.ShapeDtypeStruct((N, C, HW), x_nchw.dtype),
        grid_spec=pltpu.PrefetchScalarGridSpec(
            num_scalar_prefetch=0,
            grid=(N,),
            in_specs=[
                pl.BlockSpec((1, HW), lambda n: (0, 0)),          # col indices
                pl.BlockSpec((1, C, HW), lambda n: (n, 0, 0)),    # x
                pl.BlockSpec((C, 9 * C), lambda n: (0, 0)),       # w1
                pl.BlockSpec((C, 1), lambda n: (0, 0)),           # b1
                pl.BlockSpec((C, 9 * C), lambda n: (0, 0)),       # w2
                pl.BlockSpec((C, 1), lambda n: (0, 0)),           # b2
            ],
            out_specs=pl.BlockSpec((1, C, HW), lambda n: (n, 0, 0)),
        ),
        compiler_params=pltpu.CompilerParams(
            dimension_semantics=("parallel",),
            vmem_limit_bytes=vmem_limit,
        ),
    )(col, x_flat, w1m, b1c, w2m, b2c)

    return out.reshape(N, C, H, W)


def resblock_ref(x_nchw, w1, b1, w2, b2, *, dilation=1):
    """Pure-JAX reference (matches PyTorch ResBlock semantics)."""
    d = dilation
    x = jnp.transpose(x_nchw, (0, 2, 3, 1))

    def conv(v, w, b):
        y = lax.conv_general_dilated(
            v, w, window_strides=(1, 1), padding=[(d, d), (d, d)],
            rhs_dilation=(d, d), dimension_numbers=('NHWC', 'HWIO', 'NHWC'),
            precision=lax.Precision.HIGHEST)
        return y + b

    def leaky(v):
        return jnp.where(v >= 0, v, 0.2 * v)

    t = leaky(conv(x, w1, b1))
    y = leaky(conv(t, w2, b2) + x)
    return jnp.transpose(y, (0, 3, 1, 2))


if __name__ == "__main__":
    N, C, H, W = 2, 4, 16, 16

    key = jax.random.PRNGKey(0)
    kx, k1, k2, k3, k4 = jax.random.split(key, 5)

    x = jax.random.normal(kx, (N, C, H, W), dtype=jnp.float32)
    scale = 1.0 / (3.0 * 3.0 * C) ** 0.5
    w1 = jax.random.uniform(k1, (3, 3, C, C), jnp.float32, -scale, scale)
    b1 = jax.random.uniform(k2, (C,), jnp.float32, -scale, scale)
    w2 = jax.random.uniform(k3, (3, 3, C, C), jnp.float32, -scale, scale)
    b2 = jax.random.uniform(k4, (C,), jnp.float32, -scale, scale)

    # f32 MXU path, dilation=1 (strict check vs. f32 reference)
    ref1 = resblock_ref(x, w1, b1, w2, b2, dilation=1)
    out1 = jax.block_until_ready(resblock_pallas(x, w1, b1, w2, b2, dilation=1))
    assert out1.shape == (N, C, H, W)
    assert jnp.allclose(out1, ref1, atol=1e-4, rtol=1e-4), "f32 d=1 mismatch"

    # f32 MXU path, dilation=2 (exercises the dilated-tap / mask logic)
    ref2 = resblock_ref(x, w1, b1, w2, b2, dilation=2)
    out2 = jax.block_until_ready(resblock_pallas(x, w1, b1, w2, b2, dilation=2))
    assert jnp.allclose(out2, ref2, atol=1e-4, rtol=1e-4), "f32 d=2 mismatch"

    # bf16 MXU operands (v6e/v7x lever), f32 accumulate/epilogue; loose tolerance.
    out_bf16 = jax.block_until_ready(
        resblock_pallas(x, w1, b1, w2, b2, dilation=1, mm_dtype=jnp.bfloat16))
    assert jnp.allclose(out_bf16, ref1, atol=5e-2, rtol=5e-2), "bf16 d=1 mismatch"

    print("KERNEL_OK")
</pallas_src>

<mosaic_0001>
module attributes {stable_mosaic.version = 11 : i64} {
  func.func @_resblock_kernel(%arg0: i32, %arg1: memref<1x256xi32, #tpu.memory_space<vmem>>, %arg2: memref<1x4x256xf32, #tpu.memory_space<vmem>>, %arg3: memref<4x36xf32, #tpu.memory_space<vmem>>, %arg4: memref<4x1xf32, #tpu.memory_space<vmem>>, %arg5: memref<4x36xf32, #tpu.memory_space<vmem>>, %arg6: memref<4x1xf32, #tpu.memory_space<vmem>>, %arg7: memref<1x4x256xf32, #tpu.memory_space<vmem>>) attributes {dimension_semantics = [#tpu.dimension_semantics<parallel>], iteration_bounds = array<i64: 2>, scalar_prefetch = 0 : i64, scratch_operands = 0 : i64, tpu.core_type = #tpu.core_type<tc>, window_params = [{pipeline_mode = #tpu.pipeline_mode<synchronous>, transform_indices = @transform_0, window_bounds = array<i64: 1, 256>}, {transform_indices = @transform_1, window_bounds = array<i64: 1, 4, 256>}, {pipeline_mode = #tpu.pipeline_mode<synchronous>, transform_indices = @transform_2, window_bounds = array<i64: 4, 36>}, {pipeline_mode = #tpu.pipeline_mode<synchronous>, transform_indices = @transform_3, window_bounds = array<i64: 4, 1>}, {pipeline_mode = #tpu.pipeline_mode<synchronous>, transform_indices = @transform_4, window_bounds = array<i64: 4, 36>}, {pipeline_mode = #tpu.pipeline_mode<synchronous>, transform_indices = @transform_5, window_bounds = array<i64: 4, 1>}, {transform_indices = @transform_6, window_bounds = array<i64: 1, 4, 256>}]} {
    %c0 = arith.constant 0 : index
    %c0_0 = arith.constant 0 : index
    %0 = vector.load %arg1[%c0, %c0_0] : memref<1x256xi32, #tpu.memory_space<vmem>>, vector<1x256xi32>
    %c1_i32 = arith.constant 1 : i32
    %1 = vector.broadcast %c1_i32 : i32 to vector<1x256xi32>
    %2 = arith.cmpi sge, %0, %1 : vector<1x256xi32>
    %3 = vector.shape_cast %2 : vector<1x256xi1> to vector<1x256xi1>
    %4 = vector.broadcast %3 : vector<1x256xi1> to vector<4x256xi1>
    %c15_i32 = arith.constant 15 : i32
    %5 = vector.broadcast %c15_i32 : i32 to vector<1x256xi32>
    %6 = arith.cmpi slt, %0, %5 : vector<1x256xi32>
    %7 = vector.shape_cast %6 : vector<1x256xi1> to vector<1x256xi1>
    %8 = vector.broadcast %7 : vector<1x256xi1> to vector<4x256xi1>
    %c0_1 = arith.constant 0 : index
    %c0_2 = arith.constant 0 : index
    %c0_3 = arith.constant 0 : index
    %9 = vector.load %arg2[%c0_1, %c0_2, %c0_3] : memref<1x4x256xf32, #tpu.memory_space<vmem>>, vector<1x4x256xf32>
    %10 = vector.shape_cast %9 : vector<1x4x256xf32> to vector<4x256xf32>
    %cst = arith.constant 0.000000e+00 : f32
    %11 = vector.broadcast %cst : f32 to vector<4x17xf32>
    %12 = tpu.concatenate %11, %10, %11 in 1 : vector<4x17xf32>, vector<4x256xf32>, vector<4x17xf32> -> vector<4x290xf32>
    %13 = vector.extract_strided_slice %12 {offsets = [0, 0], sizes = [4, 256], strides = [1, 1]} : vector<4x290xf32> to vector<4x256xf32>
    %cst_4 = arith.constant 0.000000e+00 : f32
    %14 = vector.broadcast %cst_4 : f32 to vector<4x256xf32>
    %15 = arith.select %4, %13, %14 : vector<4x256xi1>, vector<4x256xf32>
    %16 = vector.extract_strided_slice %12 {offsets = [0, 1], sizes = [4, 256], strides = [1, 1]} : vector<4x290xf32> to vector<4x256xf32>
    %17 = vector.extract_strided_slice %12 {offsets = [0, 2], sizes = [4, 256], strides = [1, 1]} : vector<4x290xf32> to vector<4x256xf32>
    %cst_5 = arith.constant 0.000000e+00 : f32
    %18 = vector.broadcast %cst_5 : f32 to vector<4x256xf32>
    %19 = arith.select %8, %17, %18 : vector<4x256xi1>, vector<4x256xf32>
    %20 = vector.extract_strided_slice %12 {offsets = [0, 16], sizes = [4, 256], strides = [1, 1]} : vector<4x290xf32> to vector<4x256xf32>
    %cst_6 = arith.constant 0.000000e+00 : f32
    %21 = vector.broadcast %cst_6 : f32 to vector<4x256xf32>
    %22 = arith.select %4, %20, %21 : vector<4x256xi1>, vector<4x256xf32>
    %23 = vector.extract_strided_slice %12 {offsets = [0, 17], sizes = [4, 256], strides = [1, 1]} : vector<4x290xf32> to vector<4x256xf32>
    %24 = vector.extract_strided_slice %12 {offsets = [0, 18], sizes = [4, 256], strides = [1, 1]} : vector<4x290xf32> to vector<4x256xf32>
    %cst_7 = arith.constant 0.000000e+00 : f32
    %25 = vector.broadcast %cst_7 : f32 to vector<4x256xf32>
    %26 = arith.select %8, %24, %25 : vector<4x256xi1>, vector<4x256xf32>
    %27 = vector.extract_strided_slice %12 {offsets = [0, 32], sizes = [4, 256], strides = [1, 1]} : vector<4x290xf32> to vector<4x256xf32>
    %cst_8 = arith.constant 0.000000e+00 : f32
    %28 = vector.broadcast %cst_8 : f32 to vector<4x256xf32>
    %29 = arith.select %4, %27, %28 : vector<4x256xi1>, vector<4x256xf32>
    %30 = vector.extract_strided_slice %12 {offsets = [0, 33], sizes = [4, 256], strides = [1, 1]} : vector<4x290xf32> to vector<4x256xf32>
    %31 = vector.extract_strided_slice %12 {offsets = [0, 34], sizes = [4, 256], strides = [1, 1]} : vector<4x290xf32> to vector<4x256xf32>
    %cst_9 = arith.constant 0.000000e+00 : f32
    %32 = vector.broadcast %cst_9 : f32 to vector<4x256xf32>
    %33 = arith.select %8, %31, %32 : vector<4x256xi1>, vector<4x256xf32>
    %34 = tpu.concatenate %15, %16, %19, %22, %23, %26, %29, %30, %33 in 0 : vector<4x256xf32>, vector<4x256xf32>, vector<4x256xf32>, vector<4x256xf32>, vector<4x256xf32>, vector<4x256xf32>, vector<4x256xf32>, vector<4x256xf32>, vector<4x256xf32> -> vector<36x256xf32>
    %c0_10 = arith.constant 0 : index
    %c0_11 = arith.constant 0 : index
    %35 = vector.load %arg3[%c0_10, %c0_11] : memref<4x36xf32, #tpu.memory_space<vmem>>, vector<4x36xf32>
    %cst_12 = arith.constant dense<0.000000e+00> : vector<4x256xf32>
    %36 = tpu.matmul %35, %34, %cst_12 {dimension_numbers = #tpu.dot_dimension_numbers<[1], [0], [0], [1], [0, 0, 1, 1], [], []>} : vector<4x36xf32>, vector<36x256xf32>, vector<4x256xf32> -> vector<4x256xf32>
    %c0_13 = arith.constant 0 : index
    %c0_14 = arith.constant 0 : index
    %37 = vector.load %arg4[%c0_13, %c0_14] : memref<4x1xf32, #tpu.memory_space<vmem>>, vector<4x1xf32>
    %38 = vector.broadcast %37 : vector<4x1xf32> to vector<4x256xf32>
    %39 = arith.addf %36, %38 : vector<4x256xf32>
    %cst_15 = arith.constant 0.000000e+00 : f32
    %40 = vector.broadcast %cst_15 : f32 to vector<4x256xf32>
    %41 = arith.cmpf oge, %39, %40 : vector<4x256xf32>
    %cst_16 = arith.constant 2.000000e-01 : f32
    %42 = vector.broadcast %cst_16 : f32 to vector<4x256xf32>
    %43 = arith.mulf %42, %39 : vector<4x256xf32>
    %44 = arith.select %41, %39, %43 : vector<4x256xi1>, vector<4x256xf32>
    %cst_17 = arith.constant 0.000000e+00 : f32
    %45 = vector.broadcast %cst_17 : f32 to vector<4x17xf32>
    %46 = tpu.concatenate %45, %44, %45 in 1 : vector<4x17xf32>, vector<4x256xf32>, vector<4x17xf32> -> vector<4x290xf32>
    %47 = vector.extract_strided_slice %46 {offsets = [0, 0], sizes = [4, 256], strides = [1, 1]} : vector<4x290xf32> to vector<4x256xf32>
    %cst_18 = arith.constant 0.000000e+00 : f32
    %48 = vector.broadcast %cst_18 : f32 to vector<4x256xf32>
    %49 = arith.select %4, %47, %48 : vector<4x256xi1>, vector<4x256xf32>
    %50 = vector.extract_strided_slice %46 {offsets = [0, 1], sizes = [4, 256], strides = [1, 1]} : vector<4x290xf32> to vector<4x256xf32>
    %51 = vector.extract_strided_slice %46 {offsets = [0, 2], sizes = [4, 256], strides = [1, 1]} : vector<4x290xf32> to vector<4x256xf32>
    %cst_19 = arith.constant 0.000000e+00 : f32
    %52 = vector.broadcast %cst_19 : f32 to vector<4x256xf32>
    %53 = arith.select %8, %51, %52 : vector<4x256xi1>, vector<4x256xf32>
    %54 = vector.extract_strided_slice %46 {offsets = [0, 16], sizes = [4, 256], strides = [1, 1]} : vector<4x290xf32> to vector<4x256xf32>
    %cst_20 = arith.constant 0.000000e+00 : f32
    %55 = vector.broadcast %cst_20 : f32 to vector<4x256xf32>
    %56 = arith.select %4, %54, %55 : vector<4x256xi1>, vector<4x256xf32>
    %57 = vector.extract_strided_slice %46 {offsets = [0, 17], sizes = [4, 256], strides = [1, 1]} : vector<4x290xf32> to vector<4x256xf32>
    %58 = vector.extract_strided_slice %46 {offsets = [0, 18], sizes = [4, 256], strides = [1, 1]} : vector<4x290xf32> to vector<4x256xf32>
    %cst_21 = arith.constant 0.000000e+00 : f32
    %59 = vector.broadcast %cst_21 : f32 to vector<4x256xf32>
    %60 = arith.select %8, %58, %59 : vector<4x256xi1>, vector<4x256xf32>
    %61 = vector.extract_strided_slice %46 {offsets = [0, 32], sizes = [4, 256], strides = [1, 1]} : vector<4x290xf32> to vector<4x256xf32>
    %cst_22 = arith.constant 0.000000e+00 : f32
    %62 = vector.broadcast %cst_22 : f32 to vector<4x256xf32>
    %63 = arith.select %4, %61, %62 : vector<4x256xi1>, vector<4x256xf32>
    %64 = vector.extract_strided_slice %46 {offsets = [0, 33], sizes = [4, 256], strides = [1, 1]} : vector<4x290xf32> to vector<4x256xf32>
    %65 = vector.extract_strided_slice %46 {offsets = [0, 34], sizes = [4, 256], strides = [1, 1]} : vector<4x290xf32> to vector<4x256xf32>
    %cst_23 = arith.constant 0.000000e+00 : f32
    %66 = vector.broadcast %cst_23 : f32 to vector<4x256xf32>
    %67 = arith.select %8, %65, %66 : vector<4x256xi1>, vector<4x256xf32>
    %68 = tpu.concatenate %49, %50, %53, %56, %57, %60, %63, %64, %67 in 0 : vector<4x256xf32>, vector<4x256xf32>, vector<4x256xf32>, vector<4x256xf32>, vector<4x256xf32>, vector<4x256xf32>, vector<4x256xf32>, vector<4x256xf32>, vector<4x256xf32> -> vector<36x256xf32>
    %c0_24 = arith.constant 0 : index
    %c0_25 = arith.constant 0 : index
    %69 = vector.load %arg5[%c0_24, %c0_25] : memref<4x36xf32, #tpu.memory_space<vmem>>, vector<4x36xf32>
    %cst_26 = arith.constant dense<0.000000e+00> : vector<4x256xf32>
    %70 = tpu.matmul %69, %68, %cst_26 {dimension_numbers = #tpu.dot_dimension_numbers<[1], [0], [0], [1], [0, 0, 1, 1], [], []>} : vector<4x36xf32>, vector<36x256xf32>, vector<4x256xf32> -> vector<4x256xf32>
    %c0_27 = arith.constant 0 : index
    %c0_28 = arith.constant 0 : index
    %71 = vector.load %arg6[%c0_27, %c0_28] : memref<4x1xf32, #tpu.memory_space<vmem>>, vector<4x1xf32>
    %72 = vector.broadcast %71 : vector<4x1xf32> to vector<4x256xf32>
    %73 = arith.addf %70, %72 : vector<4x256xf32>
    %74 = arith.addf %73, %10 : vector<4x256xf32>
    %cst_29 = arith.constant 0.000000e+00 : f32
    %75 = vector.broadcast %cst_29 : f32 to vector<4x256xf32>
    %76 = arith.cmpf oge, %74, %75 : vector<4x256xf32>
    %cst_30 = arith.constant 2.000000e-01 : f32
    %77 = vector.broadcast %cst_30 : f32 to vector<4x256xf32>
    %78 = arith.mulf %77, %74 : vector<4x256xf32>
    %79 = arith.select %76, %74, %78 : vector<4x256xi1>, vector<4x256xf32>
    %c0_31 = arith.constant 0 : index
    %c0_32 = arith.constant 0 : index
    %c0_33 = arith.constant 0 : index
    %80 = vector.load %arg7[%c0_31, %c0_32, %c0_33] : memref<1x4x256xf32, #tpu.memory_space<vmem>>, vector<1x4x256xf32>
    %81 = vector.shape_cast %80 : vector<1x4x256xf32> to vector<4x256xf32>
    %82 = vector.shape_cast %79 : vector<4x256xf32> to vector<1x4x256xf32>
    tpu.vector_store %arg7[%c0_31, %c0_32, %c0_33], %82 {strides = array<i32>} : memref<1x4x256xf32, #tpu.memory_space<vmem>>, vector<1x4x256xf32>,
    return
  }
  func.func @transform_0(%arg0: i32) -> (i32, i32) {
    %c0_i32 = arith.constant 0 : i32
    %c0_i32_0 = arith.constant 0 : i32
    %c0_i32_1 = arith.constant 0 : i32
    return %c0_i32, %c0_i32_0 : i32, i32
  }
  func.func @transform_1(%arg0: i32) -> (i32, i32, i32) {
    %c0_i32 = arith.constant 0 : i32
    %c0_i32_0 = arith.constant 0 : i32
    %c0_i32_1 = arith.constant 0 : i32
    return %arg0, %c0_i32, %c0_i32_0 : i32, i32, i32
  }
  func.func @transform_2(%arg0: i32) -> (i32, i32) {
    %c0_i32 = arith.constant 0 : i32
    %c0_i32_0 = arith.constant 0 : i32
    %c0_i32_1 = arith.constant 0 : i32
    return %c0_i32, %c0_i32_0 : i32, i32
  }
  func.func @transform_3(%arg0: i32) -> (i32, i32) {
    %c0_i32 = arith.constant 0 : i32
    %c0_i32_0 = arith.constant 0 : i32
    %c0_i32_1 = arith.constant 0 : i32
    return %c0_i32, %c0_i32_0 : i32, i32
  }
  func.func @transform_4(%arg0: i32) -> (i32, i32) {
    %c0_i32 = arith.constant 0 : i32
    %c0_i32_0 = arith.constant 0 : i32
    %c0_i32_1 = arith.constant 0 : i32
    return %c0_i32, %c0_i32_0 : i32, i32
  }
  func.func @transform_5(%arg0: i32) -> (i32, i32) {
    %c0_i32 = arith.constant 0 : i32
    %c0_i32_0 = arith.constant 0 : i32
    %c0_i32_1 = arith.constant 0 : i32
    return %c0_i32, %c0_i32_0 : i32, i32
  }
  func.func @transform_6(%arg0: i32) -> (i32, i32, i32) {
    %c0_i32 = arith.constant 0 : i32
    %c0_i32_0 = arith.constant 0 : i32
    %c0_i32_1 = arith.constant 0 : i32
    return %arg0, %c0_i32, %c0_i32_0 : i32, i32, i32
  }
}

</mosaic_0001>

<llo_original>
// kernel: tpu_custom_call.1
$region0: #{tpu_custom_call.1}
  #allocation0 [shape = 'u32[]', space=smem, size = 0x4, offset = 0x4, fixed_abs, tag = 'smem constant byte address 0x4 - core index']
  #allocation1 [shape = 'u32[144,128]{1,0:T(1,128)}', space=vmem, size = 0x12000, scoped, tag = 'internal scratch']
  %s0 = inlined_call_operand.vmem [shape: s32[1,256], index: 0, kind: input, shape index: {}]
  %s1 = inlined_call_operand.hbm [shape: f32[2,4,256], index: 1, kind: input, shape index: {}]
  %s2 = inlined_call_operand.vmem [shape: f32[4,36], index: 2, kind: input, shape index: {}]
  %s3 = inlined_call_operand.vmem [shape: f32[4,1], index: 3, kind: input, shape index: {}]
  %s4 = inlined_call_operand.vmem [shape: f32[4,36], index: 4, kind: input, shape index: {}]
  %s5 = inlined_call_operand.vmem [shape: f32[4,1], index: 5, kind: input, shape index: {}]
  %s6 = inlined_call_operand.hbm [shape: f32[2,4,256], index: 6, kind: output, shape index: {}]
  %s7 = sld [smem:[#allocation0]]
  $region61: #{tpu_custom_call.1} parent=0
    _
  %s9 = ssub.s32 1, %s7
  %s10 = scalar_select 0, %s9, %s7
  $region1: #{tpu_custom_call.1} parent=0
    #allocation2 [shape = 'u8[8192]{0}', space=vmem, size = 0x2000, scoped, tag = 'input window, operand 1']
    #allocation3 [shape = 's32[2]{0}', space=sflag, size = 0x8, scoped, tag = 'scoped memory for tpu_custom_call.1']
    #allocation4 [shape = 's32[2]{0}', space=sflag, size = 0x8, scoped, tag = 'scoped memory for tpu_custom_call.1']
    #allocation5 [shape = 'u8[8192]{0}', space=vmem, size = 0x2000, scoped, tag = 'output window, operand 0']
    %11 = vsyncpa [#allocation3], 0
    %s12 = scalar_lea.sflag [#allocation3], 1
    %13 = vsyncpa %s12, 0
    %14 = vsyncpa [#allocation4], 0
    %s15 = scalar_lea.sflag [#allocation4], 1
    %16 = vsyncpa %s15, 0
    loop: start=0, step=1, limit=4
    $region2: #{tpu_custom_call.1} parent=1 // loop_pre_header
      _
    $region3: #{tpu_custom_call.1} parent=1 // loop_header
      %s18 = sphi 0, %s22
      %p19 = scmp.ge.s32.totalorder %s18, 4
      %s26 = sphi 0, %s26
      %s28 = sphi 0, %s26
      %s29 = sphi 0, %s28
      %s43 = sphi 0, %s29
      %s49 = sphi 0, %s51
      %s52 = sphi 0, %s49
      %s53 = sphi 0, %s52
      %s69 = sphi 0, %s53
      %s73 = sphi 0, %s73
      %s75 = sphi 0, %s73
      %s76 = sphi 0, %s75
      %s90 = sphi 0, %s76
      %s94 = sphi 0, %s94
      %s96 = sphi 0, %s94
      %s97 = sphi 0, %s96
      %s111 = sphi 0, %s97
      %s115 = sphi 0, %s115
      %s117 = sphi 0, %s115
      %s118 = sphi 0, %s117
      %s132 = sphi 0, %s118
      %s136 = sphi 0, %s136
      %s138 = sphi 0, %s136
      %s139 = sphi 0, %s138
      %s153 = sphi 0, %s139
      %s159 = sphi 0, %s161
      %s162 = sphi 0, %s159
      %s163 = sphi 0, %s162
      %s179 = sphi 0, %s163
    $region4: #{tpu_custom_call.1} parent=1 // loop_header_branch
      %21 = sbr.rel (%p19) target = $region8
    $region5: #{tpu_custom_call.1} parent=1 // loop_body
      %s23 = ssub.s32 %s18, 1
      %s24 = ssub.s32 %s18, 2
      %s25 = sadd.s32 %s18, 1
      %s27 = sadd.s32 %s26, 1
      %p30 = scmp.eq.s32.totalorder %s18, 1
      %p31 = scmp.ne.s32.totalorder %s26, %s28
      %p32 = scmp.eq.s32.totalorder %s18, 0
      %p33 = por %p31, %p32
      %p34 = scmp.ne.s32.totalorder %s26, %s28
      %p35 = scmp.eq.s32.totalorder %s23, 1
      %p36 = por %p34, %p35
      %p37 = scmp.ne.s32.totalorder %s28, %s29
      %p38 = scmp.eq.s32.totalorder %s23, 0
      %p39 = por %p37, %p38
      %p40 = scmp.ne.s32.totalorder %s28, %s29
      %p41 = scmp.eq.s32.totalorder %s24, 1
      %p42 = por %p40, %p41
      %p44 = scmp.ne.s32.totalorder %s29, %s43
      %p45 = scmp.eq.s32.totalorder %s24, 0
      %p46 = por %p44, %p45
      %s47 = ssub.s32 %s18, %s25
      %p48 = scmp.eq.s32.totalorder %s47, 0
      %s50 = sadd.s32 %s49, 1
      %s51 = scalar_select %p48, %s49, %s50
      %p54 = pneg %p48
      %p55 = scmp.eq.s32.totalorder %s18, 1
      %p56 = por %p54, %p55
      %p57 = scmp.ne.s32.totalorder %s49, %s52
      %p58 = scmp.eq.s32.totalorder %s18, 0
      %p59 = por %p57, %p58
      %p60 = scmp.ne.s32.totalorder %s49, %s52
      %p61 = scmp.eq.s32.totalorder %s23, 1
      %p62 = por %p60, %p61
      %p63 = scmp.ne.s32.totalorder %s52, %s53
      %p64 = scmp.eq.s32.totalorder %s23, 0
      %p65 = por %p63, %p64
      %p66 = scmp.ne.s32.totalorder %s52, %s53
      %p67 = scmp.eq.s32.totalorder %s24, 1
      %p68 = por %p66, %p67
      %p70 = scmp.ne.s32.totalorder %s53, %s69
      %p71 = scmp.eq.s32.totalorder %s24, 0
      %p72 = por %p70, %p71
      %s74 = sadd.s32 %s73, 1
      %p77 = scmp.eq.s32.totalorder %s18, 1
      %p78 = scmp.ne.s32.totalorder %s73, %s75
      %p79 = scmp.eq.s32.totalorder %s18, 0
      %p80 = por %p78, %p79
      %p81 = scmp.ne.s32.totalorder %s73, %s75
      %p82 = scmp.eq.s32.totalorder %s23, 1
      %p83 = por %p81, %p82
      %p84 = scmp.ne.s32.totalorder %s75, %s76
      %p85 = scmp.eq.s32.totalorder %s23, 0
      %p86 = por %p84, %p85
      %p87 = scmp.ne.s32.totalorder %s75, %s76
      %p88 = scmp.eq.s32.totalorder %s24, 1
      %p89 = por %p87, %p88
      %p91 = scmp.ne.s32.totalorder %s76, %s90
      %p92 = scmp.eq.s32.totalorder %s24, 0
      %p93 = por %p91, %p92
      %s95 = sadd.s32 %s94, 1
      %p98 = scmp.eq.s32.totalorder %s18, 1
      %p99 = scmp.ne.s32.totalorder %s94, %s96
      %p100 = scmp.eq.s32.totalorder %s18, 0
      %p101 = por %p99, %p100
      %p102 = scmp.ne.s32.totalorder %s94, %s96
      %p103 = scmp.eq.s32.totalorder %s23, 1
      %p104 = por %p102, %p103
      %p105 = scmp.ne.s32.totalorder %s96, %s97
      %p106 = scmp.eq.s32.totalorder %s23, 0
      %p107 = por %p105, %p106
      %p108 = scmp.ne.s32.totalorder %s96, %s97
      %p109 = scmp.eq.s32.totalorder %s24, 1
      %p110 = por %p108, %p109
      %p112 = scmp.ne.s32.totalorder %s97, %s111
      %p113 = scmp.eq.s32.totalorder %s24, 0
      %p114 = por %p112, %p113
      %s116 = sadd.s32 %s115, 1
      %p119 = scmp.eq.s32.totalorder %s18, 1
      %p120 = scmp.ne.s32.totalorder %s115, %s117
      %p121 = scmp.eq.s32.totalorder %s18, 0
      %p122 = por %p120, %p121
      %p123 = scmp.ne.s32.totalorder %s115, %s117
      %p124 = scmp.eq.s32.totalorder %s23, 1
      %p125 = por %p123, %p124
      %p126 = scmp.ne.s32.totalorder %s117, %s118
      %p127 = scmp.eq.s32.totalorder %s23, 0
      %p128 = por %p126, %p127
      %p129 = scmp.ne.s32.totalorder %s117, %s118
      %p130 = scmp.eq.s32.totalorder %s24, 1
      %p131 = por %p129, %p130
      %p133 = scmp.ne.s32.totalorder %s118, %s132
      %p134 = scmp.eq.s32.totalorder %s24, 0
      %p135 = por %p133, %p134
      %s137 = sadd.s32 %s136, 1
      %p140 = scmp.eq.s32.totalorder %s18, 1
      %p141 = scmp.ne.s32.totalorder %s136, %s138
      %p142 = scmp.eq.s32.totalorder %s18, 0
      %p143 = por %p141, %p142
      %p144 = scmp.ne.s32.totalorder %s136, %s138
      %p145 = scmp.eq.s32.totalorder %s23, 1
      %p146 = por %p144, %p145
      %p147 = scmp.ne.s32.totalorder %s138, %s139
      %p148 = scmp.eq.s32.totalorder %s23, 0
      %p149 = por %p147, %p148
      %p150 = scmp.ne.s32.totalorder %s138, %s139
      %p151 = scmp.eq.s32.totalorder %s24, 1
      %p152 = por %p150, %p151
      %p154 = scmp.ne.s32.totalorder %s139, %s153
      %p155 = scmp.eq.s32.totalorder %s24, 0
      %p156 = por %p154, %p155
      %s157 = ssub.s32 %s18, %s25
      %p158 = scmp.eq.s32.totalorder %s157, 0
      %s160 = sadd.s32 %s159, 1
      %s161 = scalar_select %p158, %s159, %s160
      %p164 = pneg %p158
      %p165 = scmp.eq.s32.totalorder %s18, 1
      %p166 = por %p164, %p165
      %p167 = scmp.ne.s32.totalorder %s159, %s162
      %p168 = scmp.eq.s32.totalorder %s18, 0
      %p169 = por %p167, %p168
      %p170 = scmp.ne.s32.totalorder %s159, %s162
      %p171 = scmp.eq.s32.totalorder %s23, 1
      %p172 = por %p170, %p171
      %p173 = scmp.ne.s32.totalorder %s162, %s163
      %p174 = scmp.eq.s32.totalorder %s23, 0
      %p175 = por %p173, %p174
      %p176 = scmp.ne.s32.totalorder %s162, %s163
      %p177 = scmp.eq.s32.totalorder %s24, 1
      %p178 = por %p176, %p177
      %p180 = scmp.ne.s32.totalorder %s163, %s179
      %p181 = scmp.eq.s32.totalorder %s24, 0
      %p182 = por %p180, %p181
      %p183 = scmp.le.s32.totalorder 1, %s18
      %p184 = scmp.lt.s32.totalorder %s18, 3
      %p185 = pnand %p183, %p184
      %p186 = pneg %p185
      // Predicated region
      $region9: #{tpu_custom_call.1} parent=5 // pred_check
        _
      $region10: #{tpu_custom_call.1} parent=5 // pred_check_branch
        %188 = sbr.rel (%p185) target = $region12
      $region11: #{tpu_custom_call.1} parent=5 // pred_region
        %s189 = ssub.s32 %s18, 1
        // Predicated region
        $region13: #{tpu_custom_call.1} parent=11 // pred_check
          %p190 = pneg %p39
        $region14: #{tpu_custom_call.1} parent=11 // pred_check_branch
          %192 = sbr.rel (%p190) target = $region16
        $region15: #{tpu_custom_call.1} parent=11 // pred_region
          _
        $region16: #{tpu_custom_call.1} parent=11 // pred_fallthru
          _
        // Predicated region
        $region17: #{tpu_custom_call.1} parent=11 // pred_check
          %p193 = pneg %p86
        $region18: #{tpu_custom_call.1} parent=11 // pred_check_branch
          %195 = sbr.rel (%p193) target = $region20
        $region19: #{tpu_custom_call.1} parent=11 // pred_region
          _
        $region20: #{tpu_custom_call.1} parent=11 // pred_fallthru
          _
        // Predicated region
        $region21: #{tpu_custom_call.1} parent=11 // pred_check
          %p196 = pneg %p107
        $region22: #{tpu_custom_call.1} parent=11 // pred_check_branch
          %198 = sbr.rel (%p196) target = $region24
        $region23: #{tpu_custom_call.1} parent=11 // pred_region
          _
        $region24: #{tpu_custom_call.1} parent=11 // pred_fallthru
          _
        // Predicated region
        $region25: #{tpu_custom_call.1} parent=11 // pred_check
          %p199 = pneg %p128
        $region26: #{tpu_custom_call.1} parent=11 // pred_check_branch
          %201 = sbr.rel (%p199) target = $region28
        $region27: #{tpu_custom_call.1} parent=11 // pred_region
          _
        $region28: #{tpu_custom_call.1} parent=11 // pred_fallthru
          _
        // Predicated region
        $region29: #{tpu_custom_call.1} parent=11 // pred_check
          %p202 = pneg %p149
        $region30: #{tpu_custom_call.1} parent=11 // pred_check_branch
          %204 = sbr.rel (%p202) target = $region32
        $region31: #{tpu_custom_call.1} parent=11 // pred_region
          _
        $region32: #{tpu_custom_call.1} parent=11 // pred_fallthru
          _
      $region12: #{tpu_custom_call.1} parent=5 // pred_fallthru
        _
      %p205 = scmp.lt.s32.totalorder %s18, 2
      // Predicated region
      $region33: #{tpu_custom_call.1} parent=5 // pred_check
        %p206 = pneg %p205
      $region34: #{tpu_custom_call.1} parent=5 // pred_check_branch
        %208 = sbr.rel (%p206) target = $region36
      $region35: #{tpu_custom_call.1} parent=5 // pred_region
        // Predicated region
        $region37: #{tpu_custom_call.1} parent=35 // pred_check
          %p209 = pneg %p59
        $region38: #{tpu_custom_call.1} parent=35 // pred_check_branch
          %211 = sbr.rel (%p209) target = $region40
        $region39: #{tpu_custom_call.1} parent=35 // pred_region
          %s212 = sand.u32 %s49, 1
          %s213 = scalar_lea.sflag [#allocation3], %s212
          %s214 = sand.u32 %s49, 1
          %s215 = smul.addr %s214, 8
          %s216 = scalar_lea.vmem [#allocation2], %s215
          %s218 = ssub.s32 128, 128
          %219 = vsyncadd %s213, %s218
          %s220 = smul.addr %s18, 2
          %s221 = smul.addr %s220, 64
          %s222 = scalar_lea.hbm %s1, %s221
          %s224 = sshll.u32 %s216, 4
          %s225 = int_to_ptr.vmem [resolvable:$true] %s224
          %227 = dma.hbm_to_vmem [thread:$0]  %s222, 128, %s225, %s213
        $region40: #{tpu_custom_call.1} parent=35 // pred_fallthru
          _
      $region36: #{tpu_custom_call.1} parent=5 // pred_fallthru
        _
      %p228 = scmp.le.s32.totalorder 1, %s18
      %p229 = scmp.lt.s32.totalorder %s18, 3
      %p230 = pnand %p228, %p229
      %p231 = pneg %p230
      // Predicated region
      $region41: #{tpu_custom_call.1} parent=5 // pred_check
        _
      $region42: #{tpu_custom_call.1} parent=5 // pred_check_branch
        %233 = sbr.rel (%p230) target = $region44
      $region43: #{tpu_custom_call.1} parent=5 // pred_region
        %s234 = ssub.s32 %s18, 1
        %s235 = sand.u32 %s52, 1
        %s236 = scalar_lea.sflag [#allocation3], %s235
        %s237 = sand.u32 %s52, 1
        %s238 = smul.addr %s237, 8
        %s239 = scalar_lea.vmem [#allocation2], %s238
        // Predicated region
        $region45: #{tpu_custom_call.1} parent=43 // pred_check
          %p240 = pneg %p65
        $region46: #{tpu_custom_call.1} parent=43 // pred_check_branch
          %242 = sbr.rel (%p240) target = $region48
        $region47: #{tpu_custom_call.1} parent=43 // pred_region
          %243 = dma.done %s236, 128
        $region48: #{tpu_custom_call.1} parent=43 // pred_fallthru
          _
        %p244 = pneg %p39
        %p245 = pneg %p36
        %s246 = sand.u32 %s52, 1
        %s247 = scalar_lea.sflag [#allocation3], %s246
        %s248 = sand.u32 %s52, 1
        %s249 = smul.addr %s248, 8
        %s250 = scalar_lea.vmem [#allocation2], %s249
        %p251 = pneg %p65
        %p252 = pneg %p62
        %p253 = pneg %p86
        %p254 = pneg %p83
        %p255 = pneg %p107
        %p256 = pneg %p104
        %p257 = pneg %p128
        %p258 = pneg %p125
        %p259 = pneg %p149
        %p260 = pneg %p146
        %p261 = pneg %p175
        %p262 = pneg %p172
        %s263 = sand.u32 %s162, 1
        %s264 = scalar_lea.sflag [#allocation4], %s263
        %s265 = sand.u32 %s162, 1
        %s266 = smul.addr %s265, 8
        %s267 = scalar_lea.vmem [#allocation5], %s266
        %v268 = vld [vmem:[%s0] sm:$0x3]
        %vm269 = vcmp.ge.s32.totalorder %v268, 1
        %v270 = vsel %vm269, 1, 0
        %v271 = vlaneseq
        %v272 = vshrl.u32 %v271, 7
        %v273 = vsub.s32 0, %v272
        %v274 = vrot.slane %v270, %v273
        %v275 = vlaneseq
        %v276 = vshrl.u32 %v275, 7
        %v277 = vsub.s32 1, %v276
        %v278 = vrot.slane %v270, %v277
        %vm279 = vcmp.eq.s32.totalorder %v274, 1
        %vm280 = vcmp.eq.s32.totalorder %v278, 1
        %vm281 = vcmp.lt.s32.totalorder %v268, 15
        %v282 = vsel %vm281, 1, 0
        %v283 = vlaneseq
        %v284 = vshrl.u32 %v283, 7
        %v285 = vsub.s32 0, %v284
        %v286 = vrot.slane %v282, %v285
        %v287 = vlaneseq
        %v288 = vshrl.u32 %v287, 7
        %v289 = vsub.s32 1, %v288
        %v290 = vrot.slane %v282, %v289
        %vm291 = vcmp.eq.s32.totalorder %v286, 1
        %vm292 = vcmp.eq.s32.totalorder %v290, 1
        %v293 = vld [vmem:[%s239] sm:$0xff]
        %v295 = vcombine.high %v293, %v293
        %296 = vrot.lane.b32.xlu0 %v293, 17
        %v297 = vpop.permute.xlu0 %296
        %298 = vrot.lane.b32.xlu0 %v295, 17
        %v299 = vpop.permute.xlu0 %298
        %vm300 = vcmask 138240
        %v301 = vsel %vm300, %v297, %v299
        %v305 = vsel %vm300, 0.0, %v297
        %v306 = vsel %vm300, %v299, 0.0
        %v307 = vsel %vm279, %v305, 0.0
        %v308 = vsel %vm280, %v301, 0.0
        %311 = vrot.lane.b32.xlu0 %v305, 126
        %v312 = vpop.permute.xlu0 %311
        %313 = vrot.lane.b32.xlu0 %v301, 126
        %v314 = vpop.permute.xlu0 %313
        %315 = vrot.lane.b32.xlu0 %v306, 126
        %v316 = vpop.permute.xlu0 %315
        %vm317 = vcmask 1031168
        %v318 = vsel %vm317, %v312, %v314
        %v319 = vsel %vm317, %v314, %v316
        %v322 = vsel %vm291, %v318, 0.0
        %v323 = vsel %vm292, %v319, 0.0
        %324 = vrot.lane.b32.xlu0 %v305, 112
        %v325 = vpop.permute.xlu0 %324
        %326 = vrot.lane.b32.xlu0 %v301, 112
        %v327 = vpop.permute.xlu0 %326
        %328 = vrot.lane.b32.xlu0 %v306, 112
        %v329 = vpop.permute.xlu0 %328
        %vm330 = vcmask 916480
        %v331 = vsel %vm330, %v325, %v327
        %v332 = vsel %vm330, %v327, %v329
        %v335 = vsel %vm279, %v331, 0.0
        %v336 = vsel %vm280, %v332, 0.0
        %337 = vrot.lane.b32.xlu0 %v305, 110
        %v338 = vpop.permute.xlu0 %337
        %339 = vrot.lane.b32.xlu0 %v301, 110
        %v340 = vpop.permute.xlu0 %339
        %341 = vrot.lane.b32.xlu0 %v306, 110
        %v342 = vpop.permute.xlu0 %341
        %vm343 = vcmask 900096
        %v344 = vsel %vm343, %v338, %v340
        %v345 = vsel %vm343, %v340, %v342
        %v348 = vsel %vm291, %v344, 0.0
        %v349 = vsel %vm292, %v345, 0.0
        %350 = vrot.lane.b32.xlu0 %v305, 96
        %v351 = vpop.permute.xlu0 %350
        %352 = vrot.lane.b32.xlu0 %v301, 96
        %v353 = vpop.permute.xlu0 %352
        %354 = vrot.lane.b32.xlu0 %v306, 96
        %v355 = vpop.permute.xlu0 %354
        %vm356 = vcmask 785408
        %v357 = vsel %vm356, %v351, %v353
        %v358 = vsel %vm356, %v353, %v355
        %v361 = vsel %vm279, %v357, 0.0
        %v362 = vsel %vm280, %v358, 0.0
        %363 = vrot.lane.b32.xlu0 %v305, 94
        %v364 = vpop.permute.xlu0 %363
        %365 = vrot.lane.b32.xlu0 %v301, 94
        %v366 = vpop.permute.xlu0 %365
        %367 = vrot.lane.b32.xlu0 %v306, 94
        %v368 = vpop.permute.xlu0 %367
        %vm369 = vcmask 769024
        %v370 = vsel %vm369, %v364, %v366
        %v371 = vsel %vm369, %v366, %v368
        %v374 = vsel %vm291, %v370, 0.0
        %v375 = vsel %vm292, %v371, 0.0
        %v376 = vrot.slane %v305, 4
        %v377 = vrot.slane %v301, 4
        %v378 = vrot.slane %v306, 4
        %379 = vrot.lane.b32.xlu0 %v376, 127
        %v380 = vpop.permute.xlu0 %379
        %381 = vrot.lane.b32.xlu0 %v377, 127
        %v382 = vpop.permute.xlu0 %381
        %383 = vrot.lane.b32.xlu0 %v378, 127
        %v384 = vpop.permute.xlu0 %383
        %vm385 = vcmask 1039360
        %v386 = vsel %vm385, %v380, %v382
        %v387 = vsel %vm385, %v382, %v384
        %v392 = vrot.slane %v335, 4
        %v393 = vrot.slane %v336, 4
        %396 = vrot.lane.b32.xlu0 %v305, 111
        %v397 = vpop.permute.xlu0 %396
        %398 = vrot.lane.b32.xlu0 %v301, 111
        %v399 = vpop.permute.xlu0 %398
        %400 = vrot.lane.b32.xlu0 %v306, 111
        %v401 = vpop.permute.xlu0 %400
        %vm402 = vcmask 908288
        %v403 = vsel %vm402, %v397, %v399
        %v404 = vsel %vm402, %v399, %v401
        %v409 = vrot.slane %v348, 4
        %v410 = vrot.slane %v349, 4
        %413 = vrot.lane.b32.xlu0 %v376, 95
        %v414 = vpop.permute.xlu0 %413
        %415 = vrot.lane.b32.xlu0 %v377, 95
        %v416 = vpop.permute.xlu0 %415
        %417 = vrot.lane.b32.xlu0 %v378, 95
        %v418 = vpop.permute.xlu0 %417
        %vm419 = vcmask 777216
        %v420 = vsel %vm419, %v414, %v416
        %v421 = vsel %vm419, %v416, %v418
        %vm424 = vcmask 1043456
        %v425 = vsel %vm424, %v307, %v386
        %v426 = vsel %vm424, %v308, %v387
        %v427 = vsel %vm424, %v322, %v392
        %v428 = vsel %vm424, %v323, %v393
        %v429 = vsel %vm424, %v403, %v409
        %v430 = vsel %vm424, %v404, %v410
        %v431 = vsel %vm424, %v361, %v420
        %v432 = vsel %vm424, %v362, %v421
        %v433 = vld [vmem:[%s2] sm:$0xf]
        %v434 = vld [vmem:[%s3] sm:$0xf]
        %436 = vset.pattern.permute.xlu0 0
        %437 = vperm.xlu0 %436, %v434
        %v438 = vpop.permute.xlu0 %437
        %vm440 = vcmask 293888
        %v442 = vsel %vm440, %v433, 0
        %v445 = vsel %vm424, %v374, 0
        %v448 = vsel %vm424, %v375, 0
        %450 = vmatprep.subr.mxu0 0.0
        %451 = vmatpush1.msra.mxu0 0.0
        %452 = vmatprep.subr.mxu0 0.0
        %453 = vmatpush1.msra.mxu0 0.0
        %454 = vmatprep.subr.mxu0 0.0
        %455 = vmatpush1.msra.mxu0 0.0
        %456 = vmatprep.subr.mxu0 0.0
        %457 = vmatpush1.msra.mxu0 0.0
        %458 = vmatprep.subr.mxu0 0.0
        %459 = vmatpush1.msra.mxu0 0.0
        %460 = vmatprep.subr.mxu0 0.0
        %461 = vmatpush1.msra.mxu0 0.0
        %462 = vmatprep.subr.mxu0 0.0
        %463 = vmatpush1.msra.mxu0 0.0
        %464 = vmatprep.subr.mxu0 0.0
        %465 = vmatpush1.msra.mxu0 0.0
        %466 = vmatprep.subr.mxu0 0.0
        %467 = vmatpush1.msra.mxu0 0.0
        %468 = vmatprep.subr.mxu0 0.0
        %469 = vmatpush1.msra.mxu0 0.0
        %470 = vmatprep.subr.mxu0 0.0
        %471 = vmatpush1.msra.mxu0 0.0
        %472 = vmatprep.subr.mxu0 %v448
        %473 = vmatpush1.msra.mxu0 %v445
        %474 = vmatprep.subr.mxu0 %v432
        %475 = vmatpush1.msra.mxu0 %v431
        %476 = vmatprep.subr.mxu0 %v430
        %477 = vmatpush1.msra.mxu0 %v429
        %478 = vmatprep.subr.mxu0 %v428
        %479 = vmatpush1.msra.mxu0 %v427
        %480 = vmatprep.subr.mxu0 %v426
        %481 = vmatpush1.msra.mxu0 %v425
        %482 = vmatprep.subr.mxu0 0.0
        %483 = vmatpush2.msra.mxu0 0.0
        %484 = vmatprep.subr.mxu0 0.0
        %485 = vmatpush2.msra.mxu0 0.0
        %486 = vmatprep.subr.mxu0 0.0
        %487 = vmatpush2.msra.mxu0 0.0
        %488 = vmatprep.subr.mxu0 0.0
        %489 = vmatpush2.msra.mxu0 0.0
        %490 = vmatprep.subr.mxu0 0.0
        %491 = vmatpush2.msra.mxu0 0.0
        %492 = vmatprep.subr.mxu0 0.0
        %493 = vmatpush2.msra.mxu0 0.0
        %494 = vmatprep.subr.mxu0 0.0
        %495 = vmatpush2.msra.mxu0 0.0
        %496 = vmatprep.subr.mxu0 0.0
        %497 = vmatpush2.msra.mxu0 0.0
        %498 = vmatprep.subr.mxu0 0.0
        %499 = vmatpush2.msra.mxu0 0.0
        %500 = vmatprep.subr.mxu0 0.0
        %501 = vmatpush2.msra.mxu0 0.0
        %502 = vmatprep.subr.mxu0 0.0
        %503 = vmatpush2.msra.mxu0 0.0
        %504 = vmatprep.subr.mxu0 0.0
        %505 = vmatpush2.msra.mxu0 0.0
        %506 = vmatprep.subr.mxu0 0.0
        %507 = vmatpush2.msra.mxu0 0.0
        %508 = vmatprep.subr.mxu0 0.0
        %509 = vmatpush2.msra.mxu0 0.0
        %510 = vmatprep.subr.mxu0 0.0
        %511 = vmatpush2.msra.mxu0 0.0
        %512 = vmatprep.subr.mxu0 0.0
        %513 = vmatpush2.msra.mxu0 0.0
        %514 = vmatprep.mubr.f32.mxu0 0.0
        %515 = vmatmul.mubr.f32.gmra.mxu0 %v442
        %v516 = vpop.f32.mrf.mxu0
        %v517 = vadd.f32 %v438, %v516
        %v518 = vpop.f32.mrf.mxu0
        %v519 = vadd.f32 %v438, %v518
        %520 = vdwg.mxu0
        %vm521 = vcmp.ge.f32.partialorder %v517, 0.0
        %vm522 = vcmp.ge.f32.partialorder %v519, 0.0
        %v523 = vmul.f32 %v517, 0.2
        %v524 = vmul.f32 %v519, 0.2
        %v525 = vsel %vm521, %v517, %v523
        %v526 = vsel %vm522, %v519, %v524
        %529 = vrot.lane.b32.xlu0 %v525, 17
        %v530 = vpop.permute.xlu0 %529
        %531 = vrot.lane.b32.xlu0 %v526, 17
        %v532 = vpop.permute.xlu0 %531
        %v533 = vsel %vm300, %v530, %v532
        %v537 = vsel %vm300, 0.0, %v530
        %v538 = vsel %vm300, %v532, 0.0
        %v539 = vsel %vm279, %v537, 0.0
        %v540 = vsel %vm280, %v533, 0.0
        %543 = vrot.lane.b32.xlu0 %v537, 126
        %v544 = vpop.permute.xlu0 %543
        %545 = vrot.lane.b32.xlu0 %v533, 126
        %v546 = vpop.permute.xlu0 %545
        %547 = vrot.lane.b32.xlu0 %v538, 126
        %v548 = vpop.permute.xlu0 %547
        %v549 = vsel %vm317, %v544, %v546
        %v550 = vsel %vm317, %v546, %v548
        %v553 = vsel %vm291, %v549, 0.0
        %v554 = vsel %vm292, %v550, 0.0
        %555 = vrot.lane.b32.xlu0 %v537, 112
        %v556 = vpop.permute.xlu0 %555
        %557 = vrot.lane.b32.xlu0 %v533, 112
        %v558 = vpop.permute.xlu0 %557
        %559 = vrot.lane.b32.xlu0 %v538, 112
        %v560 = vpop.permute.xlu0 %559
        %v561 = vsel %vm330, %v556, %v558
        %v562 = vsel %vm330, %v558, %v560
        %v565 = vsel %vm279, %v561, 0.0
        %v566 = vsel %vm280, %v562, 0.0
        %567 = vrot.lane.b32.xlu0 %v537, 110
        %v568 = vpop.permute.xlu0 %567
        %569 = vrot.lane.b32.xlu0 %v533, 110
        %v570 = vpop.permute.xlu0 %569
        %571 = vrot.lane.b32.xlu0 %v538, 110
        %v572 = vpop.permute.xlu0 %571
        %v573 = vsel %vm343, %v568, %v570
        %v574 = vsel %vm343, %v570, %v572
        %v577 = vsel %vm291, %v573, 0.0
        %v578 = vsel %vm292, %v574, 0.0
        %579 = vrot.lane.b32.xlu0 %v537, 96
        %v580 = vpop.permute.xlu0 %579
        %581 = vrot.lane.b32.xlu0 %v533, 96
        %v582 = vpop.permute.xlu0 %581
        %583 = vrot.lane.b32.xlu0 %v538, 96
        %v584 = vpop.permute.xlu0 %583
        %v585 = vsel %vm356, %v580, %v582
        %v586 = vsel %vm356, %v582, %v584
        %v589 = vsel %vm279, %v585, 0.0
        %v590 = vsel %vm280, %v586, 0.0
        %591 = vrot.lane.b32.xlu0 %v537, 94
        %v592 = vpop.permute.xlu0 %591
        %593 = vrot.lane.b32.xlu0 %v533, 94
        %v594 = vpop.permute.xlu0 %593
        %595 = vrot.lane.b32.xlu0 %v538, 94
        %v596 = vpop.permute.xlu0 %595
        %v597 = vsel %vm369, %v592, %v594
        %v598 = vsel %vm369, %v594, %v596
        %v601 = vsel %vm291, %v597, 0.0
        %v602 = vsel %vm292, %v598, 0.0
        %v603 = vrot.slane %v537, 4
        %v604 = vrot.slane %v533, 4
        %v605 = vrot.slane %v538, 4
        %606 = vrot.lane.b32.xlu0 %v603, 127
        %v607 = vpop.permute.xlu0 %606
        %608 = vrot.lane.b32.xlu0 %v604, 127
        %v609 = vpop.permute.xlu0 %608
        %610 = vrot.lane.b32.xlu0 %v605, 127
        %v611 = vpop.permute.xlu0 %610
        %v612 = vsel %vm385, %v607, %v609
        %v613 = vsel %vm385, %v609, %v611
        %v618 = vrot.slane %v565, 4
        %v619 = vrot.slane %v566, 4
        %622 = vrot.lane.b32.xlu0 %v537, 111
        %v623 = vpop.permute.xlu0 %622
        %624 = vrot.lane.b32.xlu0 %v533, 111
        %v625 = vpop.permute.xlu0 %624
        %626 = vrot.lane.b32.xlu0 %v538, 111
        %v627 = vpop.permute.xlu0 %626
        %v628 = vsel %vm402, %v623, %v625
        %v629 = vsel %vm402, %v625, %v627
        %v634 = vrot.slane %v577, 4
        %v635 = vrot.slane %v578, 4
        %638 = vrot.lane.b32.xlu0 %v603, 95
        %v639 = vpop.permute.xlu0 %638
        %640 = vrot.lane.b32.xlu0 %v604, 95
        %v641 = vpop.permute.xlu0 %640
        %642 = vrot.lane.b32.xlu0 %v605, 95
        %v643 = vpop.permute.xlu0 %642
        %v644 = vsel %vm419, %v639, %v641
        %v645 = vsel %vm419, %v641, %v643
        %v648 = vsel %vm424, %v539, %v612
        %v649 = vsel %vm424, %v540, %v613
        %v650 = vsel %vm424, %v553, %v618
        %v651 = vsel %vm424, %v554, %v619
        %v652 = vsel %vm424, %v628, %v634
        %v653 = vsel %vm424, %v629, %v635
        %v654 = vsel %vm424, %v589, %v644
        %v655 = vsel %vm424, %v590, %v645
        %v656 = vld [vmem:[%s4] sm:$0xf]
        %v657 = vld [vmem:[%s5] sm:$0xf]
        %659 = vset.pattern.permute.xlu0 0
        %660 = vperm.xlu0 %659, %v657
        %v661 = vpop.permute.xlu0 %660
        %v664 = vsel %vm440, %v656, 0
        %v667 = vsel %vm424, %v601, 0
        %v670 = vsel %vm424, %v602, 0
        %672 = vmatprep.subr.mxu0 0.0
        %673 = vmatpush1.msra.mxu0 0.0
        %674 = vmatprep.subr.mxu0 0.0
        %675 = vmatpush1.msra.mxu0 0.0
        %676 = vmatprep.subr.mxu0 0.0
        %677 = vmatpush1.msra.mxu0 0.0
        %678 = vmatprep.subr.mxu0 0.0
        %679 = vmatpush1.msra.mxu0 0.0
        %680 = vmatprep.subr.mxu0 0.0
        %681 = vmatpush1.msra.mxu0 0.0
        %682 = vmatprep.subr.mxu0 0.0
        %683 = vmatpush1.msra.mxu0 0.0
        %684 = vmatprep.subr.mxu0 0.0
        %685 = vmatpush1.msra.mxu0 0.0
        %686 = vmatprep.subr.mxu0 0.0
        %687 = vmatpush1.msra.mxu0 0.0
        %688 = vmatprep.subr.mxu0 0.0
        %689 = vmatpush1.msra.mxu0 0.0
        %690 = vmatprep.subr.mxu0 0.0
        %691 = vmatpush1.msra.mxu0 0.0
        %692 = vmatprep.subr.mxu0 0.0
        %693 = vmatpush1.msra.mxu0 0.0
        %694 = vmatprep.subr.mxu0 %v670
        %695 = vmatpush1.msra.mxu0 %v667
        %696 = vmatprep.subr.mxu0 %v655
        %697 = vmatpush1.msra.mxu0 %v654
        %698 = vmatprep.subr.mxu0 %v653
        %699 = vmatpush1.msra.mxu0 %v652
        %700 = vmatprep.subr.mxu0 %v651
        %701 = vmatpush1.msra.mxu0 %v650
        %702 = vmatprep.subr.mxu0 %v649
        %703 = vmatpush1.msra.mxu0 %v648
        %704 = vmatprep.subr.mxu0 0.0
        %705 = vmatpush2.msra.mxu0 0.0
        %706 = vmatprep.subr.mxu0 0.0
        %707 = vmatpush2.msra.mxu0 0.0
        %708 = vmatprep.subr.mxu0 0.0
        %709 = vmatpush2.msra.mxu0 0.0
        %710 = vmatprep.subr.mxu0 0.0
        %711 = vmatpush2.msra.mxu0 0.0
        %712 = vmatprep.subr.mxu0 0.0
        %713 = vmatpush2.msra.mxu0 0.0
        %714 = vmatprep.subr.mxu0 0.0
        %715 = vmatpush2.msra.mxu0 0.0
        %716 = vmatprep.subr.mxu0 0.0
        %717 = vmatpush2.msra.mxu0 0.0
        %718 = vmatprep.subr.mxu0 0.0
        %719 = vmatpush2.msra.mxu0 0.0
        %720 = vmatprep.subr.mxu0 0.0
        %721 = vmatpush2.msra.mxu0 0.0
        %722 = vmatprep.subr.mxu0 0.0
        %723 = vmatpush2.msra.mxu0 0.0
        %724 = vmatprep.subr.mxu0 0.0
        %725 = vmatpush2.msra.mxu0 0.0
        %726 = vmatprep.subr.mxu0 0.0
        %727 = vmatpush2.msra.mxu0 0.0
        %728 = vmatprep.subr.mxu0 0.0
        %729 = vmatpush2.msra.mxu0 0.0
        %730 = vmatprep.subr.mxu0 0.0
        %731 = vmatpush2.msra.mxu0 0.0
        %732 = vmatprep.subr.mxu0 0.0
        %733 = vmatpush2.msra.mxu0 0.0
        %734 = vmatprep.subr.mxu0 0.0
        %735 = vmatpush2.msra.mxu0 0.0
        %736 = vmatprep.mubr.f32.mxu0 0.0
        %737 = vmatmul.mubr.f32.gmra.mxu0 %v664
        %v738 = vpop.f32.mrf.mxu0
        %v739 = vadd.f32 %v661, %v738
        %v740 = vpop.f32.mrf.mxu0
        %v741 = vadd.f32 %v661, %v740
        %742 = vdwg.mxu0
        %v744 = vadd.f32 %v739, %v293
        %v745 = vadd.f32 %v741, %v295
        %vm746 = vcmp.ge.f32.partialorder %v744, 0.0
        %vm747 = vcmp.ge.f32.partialorder %v745, 0.0
        %v748 = vmul.f32 %v744, 0.2
        %v749 = vmul.f32 %v745, 0.2
        %v750 = vsel %vm746, %v744, %v748
        %v751 = vsel %vm747, %v745, %v749
        %v754 = vcombine.low %v750, %v751
        %756 = vst [vmem:[%s267] sm:$0xff] %v754
        %s757 = sand.u32 %s162, 1
        %s758 = scalar_lea.sflag [#allocation4], %s757
        %s759 = sand.u32 %s162, 1
        %s760 = smul.addr %s759, 8
        %s761 = scalar_lea.vmem [#allocation5], %s760
        // Predicated region
        $region49: #{tpu_custom_call.1} parent=43 // pred_check
          %p762 = pneg %p172
        $region50: #{tpu_custom_call.1} parent=43 // pred_check_branch
          %764 = sbr.rel (%p762) target = $region52
        $region51: #{tpu_custom_call.1} parent=43 // pred_region
          %s766 = ssub.s32 128, 128
          %767 = vsyncadd %s758, %s766
          %s768 = smul.addr %s23, 2
          %s769 = smul.addr %s768, 64
          %s770 = scalar_lea.hbm %s6, %s769
          %s772 = sshll.u32 %s761, 4
          %s773 = int_to_ptr.vmem [resolvable:$true] %s772
          %775 = dma.vmem_to_hbm [thread:$0]  %s773, 128, %s770, %s758
        $region52: #{tpu_custom_call.1} parent=43 // pred_fallthru
          _
      $region44: #{tpu_custom_call.1} parent=5 // pred_fallthru
        _
      %p776 = scmp.le.s32.totalorder 2, %s18
      // Predicated region
      $region53: #{tpu_custom_call.1} parent=5 // pred_check
        %p777 = pneg %p776
      $region54: #{tpu_custom_call.1} parent=5 // pred_check_branch
        %779 = sbr.rel (%p777) target = $region56
      $region55: #{tpu_custom_call.1} parent=5 // pred_region
        %s780 = ssub.s32 %s18, 2
        // Predicated region
        $region57: #{tpu_custom_call.1} parent=55 // pred_check
          %p781 = pneg %p178
        $region58: #{tpu_custom_call.1} parent=55 // pred_check_branch
          %783 = sbr.rel (%p781) target = $region60
        $region59: #{tpu_custom_call.1} parent=55 // pred_region
          %s784 = sand.u32 %s163, 1
          %s785 = scalar_lea.sflag [#allocation4], %s784
          %s786 = sand.u32 %s163, 1
          %s787 = smul.addr %s786, 8
          %s788 = scalar_lea.vmem [#allocation5], %s787
          %789 = dma.done %s785, 128
        $region60: #{tpu_custom_call.1} parent=55 // pred_fallthru
          _
      $region56: #{tpu_custom_call.1} parent=5 // pred_fallthru
        _
    $region6: #{tpu_custom_call.1} parent=1 // loop_footer
      %s22 = sadd.s32 1, %s18
    $region7: #{tpu_custom_call.1} parent=1 // loop_footer_branch
      %17 = sbr.rel target = $region3
    $region8: #{tpu_custom_call.1} parent=1 // loop_exit
      _
    %790 = vsyncpa [#allocation3], 1
    %s791 = scalar_lea.sflag [#allocation3], 1
    %792 = vsyncpa %s791, 1
    %793 = vsyncpa [#allocation4], 1
    %s794 = scalar_lea.sflag [#allocation4], 1
    %795 = vsyncpa %s794, 1

</llo_original>
